<compile_context>
chip_gen: v7x
topology: tpu7x:2x2x1
jax: 0.10.0
libtpu: 0.0.40
codegen_flags: <defaults>
</compile_context>

<pallas_src>
import math

import jax
import jax.numpy as jnp
from jax.experimental import pallas as pl
from jax.experimental.pallas import tpu as pltpu

# ---------------- static configuration (mirrors __init__ / args) ----------------
NODE_STEPS = 2          # node_steps
NODE_MULTIPLIER = 2     # node_multiplier != 1  -> out_conv + bn + relu branch is active
C = 8                   # args.C  (channels)
L = 128                 # args.L  (sequence length)
NUM_INPUT_NODES = 2
NUM_EDGES = sum(NUM_INPUT_NODES + i for i in range(NODE_STEPS))   # = 5 for node_steps=2
NUM_EDGE_OPS = 3        # skip, zero, conv1x1+relu
NUM_NODE_OPS = 3        # sum, hadamard, sigmoid-gated
CMAX = (NUM_INPUT_NODES + NODE_STEPS - 1) * C                      # max stacked channels = 24
LN_EPS = 1e-5
BN_EPS = 1e-5


# ---------------------------------- kernel ----------------------------------
def node_cell_kernel(xy_ref,                 # (2C, BT*L) f32   x and y stacked along channels
                     scal_ref,               # SMEM 1D f32: [skip_w(E) | node_mix(S*3) | step_w(S)]
                     bdw_ref, bdb_ref,       # (S, CMAX, CMAX) bf16, (S, CMAX, 1) f32  block-diag edge convs
                     ngw_ref, ngb_ref,       # (S, C, C) bf16,  (S, C, 1) f32          node gate convs
                     ocw_ref, ocb_ref,       # (C, C) bf16, (C, 1) f32                 out_conv (BN folded)
                     ln_g_ref, ln_b_ref,     # (C, L) f32, (C, L) f32                  LayerNorm affine
                     out_ref):               # (C, BT*L) f32
    N = out_ref.shape[-1]                    # BT * L  (static)
    BT = N // L

    xy = xy_ref[...]                         # (2C, N) f32
    x = xy[:C]
    states = [x, xy[C:2 * C]]

    def skip_w(e):
        return scal_ref[e]

    def node_w(i, k):
        return scal_ref[NUM_EDGES + i * NUM_NODE_OPS + k]

    def step_w(i):
        return scal_ref[NUM_EDGES + NODE_STEPS * NUM_NODE_OPS + i]

    offset = 0
    weighted_sum = jnp.zeros((C, N), jnp.float32)

    for i in range(NODE_STEPS):
        n = len(states)                      # NUM_INPUT_NODES + i
        # ---- one block-diagonal matmul for ALL edge convs of this step ----
        pads = [] if n * C == CMAX else [jnp.zeros((CMAX - n * C, N), jnp.float32)]
        stacked = jnp.concatenate(states + pads, axis=0).astype(jnp.bfloat16)   # (CMAX, N)
        z = jnp.dot(bdw_ref[i], stacked, preferred_element_type=jnp.float32) + bdb_ref[i]
        z = jnp.maximum(z, 0.0)              # edge_weights[:,2] already folded in (>= 0)

        # sum of mixed edge ops: skip path + (pre-scaled) conv path
        step_in = jnp.zeros((C, N), jnp.float32)
        for j in range(n):
            step_in = step_in + skip_w(offset + j) * states[j] + z[j * C:(j + 1) * C]

        # ---- mixed node op: NodeMixedOp(step_in, step_in, node_weights[i]) ----
        gate = jnp.dot(ngw_ref[i], step_in.astype(jnp.bfloat16),
                       preferred_element_type=jnp.float32) + ngb_ref[i]
        gate = jax.nn.sigmoid(gate)
        # w0*(a+a) + w1*(a*a) + w2*(a*sigmoid(conv(a)))  ==  a * (2*w0 + w1*a + w2*gate)
        s = step_in * (2.0 * node_w(i, 0) + node_w(i, 1) * step_in + node_w(i, 2) * gate)

        offset += n
        states.append(s)
        weighted_sum = weighted_sum + step_w(i) * s          # self.weights[i] * s

    # ---- node_multiplier != 1 branch: out_conv (+ folded eval BN) -> ReLU -> Dropout(eval=id) ----
    ws = jnp.dot(ocw_ref[...], weighted_sum.astype(jnp.bfloat16),
                 preferred_element_type=jnp.float32) + ocb_ref[...]
    ws = jnp.maximum(ws, 0.0)

    # ---- residual + per-sample LayerNorm([C, L]) over each 128-lane slab ----
    ws = ws + x
    ln_g = ln_g_ref[...]
    ln_b = ln_b_ref[...]
    for b in range(BT):
        sub = ws[:, b * L:(b + 1) * L]                       # (C, L), vreg-aligned slice
        mu = jnp.mean(sub)
        var = jnp.mean((sub - mu) ** 2)
        nrm = (sub - mu) * jax.lax.rsqrt(var + LN_EPS)
        out_ref[:, b * L:(b + 1) * L] = (nrm * ln_g + ln_b).astype(out_ref.dtype)


# --------------------------------- wrapper ---------------------------------
def node_cell_forward(x, y, edge_weights, node_weights, params, *, batch_block=None):
    B = x.shape[0]
    BT = batch_block if batch_block is not None else (B if B <= 8 else 8)
    assert B % BT == 0, "batch must be divisible by the batch block"
    G = B // BT
    N = BT * L
    f32, bf16 = jnp.float32, jnp.bfloat16

    # ---------- host-side folding (plain JAX, once per call) ----------
    # Fold the conv-branch architecture weight into the edge conv (softmax => non-negative,
    # so relu(w2 * z) == w2 * relu(z)).
    ew2 = edge_weights[:, 2].astype(f32)
    ecw_f = params["ecw"].astype(f32) * ew2[:, None, None]
    ecb_f = params["ecb"].astype(f32) * ew2[:, None, None]

    # Build one block-diagonal weight/bias per node step (padded to CMAX channels).
    bdw = jnp.zeros((NODE_STEPS, CMAX, CMAX), f32)
    bdb = jnp.zeros((NODE_STEPS, CMAX, 1), f32)
    off = 0
    for i in range(NODE_STEPS):
        n = NUM_INPUT_NODES + i
        for j in range(n):
            bdw = bdw.at[i, j * C:(j + 1) * C, j * C:(j + 1) * C].set(ecw_f[off + j])
            bdb = bdb.at[i, j * C:(j + 1) * C, :].set(ecb_f[off + j])
        off += n

    # Fold eval-mode BatchNorm into out_conv.
    bn_s = params["bn_scale"].astype(f32)
    ocw_f = params["ocw"].astype(f32) * bn_s
    ocb_f = params["ocb"].astype(f32) * bn_s + params["bn_shift"].astype(f32)

    # Flatten all scalars into one SMEM vector: [skip_w(E) | node_mix(S*3) | step_w(S)].
    scal = jnp.concatenate([
        edge_weights[:, 0].astype(f32).reshape(-1),
        node_weights.astype(f32).reshape(-1),
        params["step_w"].astype(f32).reshape(-1),
    ])

    # Batch-into-lanes layout: (B, C, L) -> (C, B*L); stack x and y along channels.
    x_t = jnp.transpose(x.astype(f32), (1, 0, 2)).reshape(C, B * L)
    y_t = jnp.transpose(y.astype(f32), (1, 0, 2)).reshape(C, B * L)
    xy = jnp.concatenate([x_t, y_t], axis=0)                 # (2C, B*L)

    args = (
        xy, scal,
        bdw.astype(bf16), bdb,
        params["ngw"].astype(bf16), params["ngb"].astype(f32),
        ocw_f.astype(bf16), ocb_f,
        params["ln_g"].astype(f32), params["ln_b"].astype(f32),
    )

    def full_spec(a):
        nd = a.ndim
        return pl.BlockSpec(a.shape, lambda g, _nd=nd: (0,) * _nd)

    in_specs = [
        pl.BlockSpec((2 * C, N), lambda g: (0, g)),                  # xy, blocked over batch
        pl.BlockSpec(memory_space=pltpu.MemorySpace.SMEM),           # flat scalar vector
    ] + [full_spec(a) for a in args[2:]]

    out = pl.pallas_call(
        node_cell_kernel,
        out_shape=jax.ShapeDtypeStruct((C, B * L), jnp.float32),
        grid=(G,),
        in_specs=in_specs,
        out_specs=pl.BlockSpec((C, N), lambda g: (0, g)),
        compiler_params=pltpu.CompilerParams(dimension_semantics=("parallel",)),
    )(*args)

    return out.reshape(C, B, L).transpose(1, 0, 2)           # back to (B, C, L)


# ----------------------- pure-JAX reference (for checking) -----------------------
def node_cell_reference(x, y, edge_weights, node_weights, p):
    x = x.astype(jnp.float32)
    y = y.astype(jnp.float32)

    def chan_mm(w, h):  # (C,C) x (B,C,L) -> (B,C,L)
        return jnp.einsum("oc,bcl->bol", w, h, precision="highest")

    states = [x, y]
    offset = 0
    weighted_sum = jnp.zeros_like(x)
    for i in range(NODE_STEPS):
        step_in = jnp.zeros_like(x)
        for j, h in enumerate(states):
            e = offset + j
            conv = jnp.maximum(chan_mm(p["ecw"][e], h) + p["ecb"][e][None], 0.0)
            step_in = step_in + edge_weights[e, 0] * h + edge_weights[e, 2] * conv
        gate = jax.nn.sigmoid(chan_mm(p["ngw"][i], step_in) + p["ngb"][i][None])
        s = (node_weights[i, 0] * (step_in + step_in)
             + node_weights[i, 1] * (step_in * step_in)
             + node_weights[i, 2] * (step_in * gate))
        offset += len(states)
        states.append(s)
        weighted_sum = weighted_sum + p["step_w"][i] * s

    ws = chan_mm(p["ocw"], weighted_sum) + p["ocb"][None]
    ws = ws * p["bn_scale"][None] + p["bn_shift"][None]
    ws = jnp.maximum(ws, 0.0)
    ws = ws + x
    mu = jnp.mean(ws, axis=(1, 2), keepdims=True)
    var = jnp.mean((ws - mu) ** 2, axis=(1, 2), keepdims=True)
    ws = (ws - mu) * jax.lax.rsqrt(var + LN_EPS)
    return ws * p["ln_g"][None] + p["ln_b"][None]


# ----------------------------------- main -----------------------------------
def make_params(key):
    ks = jax.random.split(key, 8)
    s = 1.0 / math.sqrt(C)
    u = lambda k, shp: jax.random.uniform(k, shp, jnp.float32, minval=-s, maxval=s)
    return dict(
        ecw=u(ks[0], (NUM_EDGES, C, C)),
        ecb=u(ks[1], (NUM_EDGES, C, 1)),
        ngw=u(ks[2], (NODE_STEPS, C, C)),
        ngb=u(ks[3], (NODE_STEPS, C, 1)),
        ocw=u(ks[4], (C, C)),
        ocb=u(ks[5], (C, 1)),
        step_w=jax.random.uniform(ks[6], (NODE_STEPS,), jnp.float32),  # nn.init.uniform_
        # eval-mode BN folded: gamma=1, beta=0, running_mean=0, running_var=1
        bn_scale=jnp.full((C, 1), 1.0 / math.sqrt(1.0 + BN_EPS), jnp.float32),
        bn_shift=jnp.zeros((C, 1), jnp.float32),
        # LayerNorm default init
        ln_g=jnp.ones((C, L), jnp.float32),
        ln_b=jnp.zeros((C, L), jnp.float32),
    )


if __name__ == "__main__":
    B = 2
    key = jax.random.PRNGKey(0)
    k_x, k_y, k_ew, k_nw, k_p = jax.random.split(key, 5)

    x = jax.random.normal(k_x, (B, C, L), jnp.float32)
    y = jax.random.normal(k_y, (B, C, L), jnp.float32)
    # architecture weights (softmaxed, DARTS-style)
    edge_weights = jax.nn.softmax(jax.random.normal(k_ew, (NUM_EDGES, NUM_EDGE_OPS)), axis=-1)
    node_weights = jax.nn.softmax(jax.random.normal(k_nw, (NODE_STEPS, NUM_NODE_OPS)), axis=-1)
    params = make_params(k_p)

    out = node_cell_forward(x, y, edge_weights, node_weights, params)
    out = jax.block_until_ready(out)

    ref = node_cell_reference(x, y, edge_weights, node_weights, params)
    assert out.shape == (B, C, L)
    assert jnp.allclose(out, ref, atol=2e-2, rtol=2e-2), (
        "mismatch: max abs err = %g" % float(jnp.max(jnp.abs(out - ref))))

    print("KERNEL_OK")
</pallas_src>

<mosaic_0001>
module attributes {stable_mosaic.version = 11 : i64} {
  func.func @node_cell_kernel(%arg0: i32, %arg1: memref<16x256xf32, #tpu.memory_space<vmem>>, %arg2: memref<13xf32, #tpu.memory_space<smem>>, %arg3: memref<2x24x24xbf16, #tpu.memory_space<vmem>>, %arg4: memref<2x24x1xf32, #tpu.memory_space<vmem>>, %arg5: memref<2x8x8xbf16, #tpu.memory_space<vmem>>, %arg6: memref<2x8x1xf32, #tpu.memory_space<vmem>>, %arg7: memref<8x8xbf16, #tpu.memory_space<vmem>>, %arg8: memref<8x1xf32, #tpu.memory_space<vmem>>, %arg9: memref<8x128xf32, #tpu.memory_space<vmem>>, %arg10: memref<8x128xf32, #tpu.memory_space<vmem>>, %arg11: memref<8x256xf32, #tpu.memory_space<vmem>>) attributes {dimension_semantics = [#tpu.dimension_semantics<parallel>], iteration_bounds = array<i64: 1>, scalar_prefetch = 0 : i64, scratch_operands = 0 : i64, tpu.core_type = #tpu.core_type<tc>, window_params = [{transform_indices = @transform_0, window_bounds = array<i64: 16, 256>}, {transform_indices = @transform_1, window_bounds = array<i64: 13>}, {pipeline_mode = #tpu.pipeline_mode<synchronous>, transform_indices = @transform_2, window_bounds = array<i64: 2, 24, 24>}, {pipeline_mode = #tpu.pipeline_mode<synchronous>, transform_indices = @transform_3, window_bounds = array<i64: 2, 24, 1>}, {pipeline_mode = #tpu.pipeline_mode<synchronous>, transform_indices = @transform_4, window_bounds = array<i64: 2, 8, 8>}, {pipeline_mode = #tpu.pipeline_mode<synchronous>, transform_indices = @transform_5, window_bounds = array<i64: 2, 8, 1>}, {pipeline_mode = #tpu.pipeline_mode<synchronous>, transform_indices = @transform_6, window_bounds = array<i64: 8, 8>}, {pipeline_mode = #tpu.pipeline_mode<synchronous>, transform_indices = @transform_7, window_bounds = array<i64: 8, 1>}, {pipeline_mode = #tpu.pipeline_mode<synchronous>, transform_indices = @transform_8, window_bounds = array<i64: 8, 128>}, {pipeline_mode = #tpu.pipeline_mode<synchronous>, transform_indices = @transform_9, window_bounds = array<i64: 8, 128>}, {transform_indices = @transform_10, window_bounds = array<i64: 8, 256>}]} {
    %c0 = arith.constant 0 : index
    %c0_0 = arith.constant 0 : index
    %0 = vector.load %arg1[%c0, %c0_0] : memref<16x256xf32, #tpu.memory_space<vmem>>, vector<16x256xf32>
    %1 = vector.extract_strided_slice %0 {offsets = [0, 0], sizes = [8, 256], strides = [1, 1]} : vector<16x256xf32> to vector<8x256xf32>
    %2 = vector.extract_strided_slice %0 {offsets = [8, 0], sizes = [8, 256], strides = [1, 1]} : vector<16x256xf32> to vector<8x256xf32>
    %cst = arith.constant 0.000000e+00 : f32
    %3 = vector.broadcast %cst : f32 to vector<8x256xf32>
    %cst_1 = arith.constant 0.000000e+00 : f32
    %4 = vector.broadcast %cst_1 : f32 to vector<8x256xf32>
    %5 = tpu.concatenate %1, %2, %4 in 0 : vector<8x256xf32>, vector<8x256xf32>, vector<8x256xf32> -> vector<24x256xf32>
    %6 = arith.truncf %5 : vector<24x256xf32> to vector<24x256xbf16>
    %c0_2 = arith.constant 0 : index
    %c0_3 = arith.constant 0 : index
    %c0_4 = arith.constant 0 : index
    %7 = vector.load %arg3[%c0_2, %c0_3, %c0_4] : memref<2x24x24xbf16, #tpu.memory_space<vmem>>, vector<1x24x24xbf16>
    %8 = vector.shape_cast %7 : vector<1x24x24xbf16> to vector<24x24xbf16>
    %cst_5 = arith.constant dense<0.000000e+00> : vector<24x256xf32>
    %9 = tpu.matmul %8, %6, %cst_5 {dimension_numbers = #tpu.dot_dimension_numbers<[1], [0], [0], [1], [0, 0, 1, 1], [], []>} : vector<24x24xbf16>, vector<24x256xbf16>, vector<24x256xf32> -> vector<24x256xf32>
    %c0_6 = arith.constant 0 : index
    %c0_7 = arith.constant 0 : index
    %c0_8 = arith.constant 0 : index
    %10 = vector.load %arg4[%c0_6, %c0_7, %c0_8] : memref<2x24x1xf32, #tpu.memory_space<vmem>>, vector<1x24x1xf32>
    %11 = vector.shape_cast %10 : vector<1x24x1xf32> to vector<24x1xf32>
    %12 = vector.broadcast %11 : vector<24x1xf32> to vector<24x256xf32>
    %13 = arith.addf %9, %12 : vector<24x256xf32>
    %cst_9 = arith.constant 0.000000e+00 : f32
    %14 = vector.broadcast %cst_9 : f32 to vector<24x256xf32>
    %15 = arith.maximumf %13, %14 : vector<24x256xf32>
    %cst_10 = arith.constant 0.000000e+00 : f32
    %16 = vector.broadcast %cst_10 : f32 to vector<8x256xf32>
    %c0_11 = arith.constant 0 : index
    %17 = memref.load %arg2[%c0_11] : memref<13xf32, #tpu.memory_space<smem>>
    %18 = vector.broadcast %17 : f32 to vector<8x256xf32>
    %19 = arith.mulf %18, %1 : vector<8x256xf32>
    %20 = arith.addf %16, %19 : vector<8x256xf32>
    %21 = vector.extract_strided_slice %15 {offsets = [0, 0], sizes = [8, 256], strides = [1, 1]} : vector<24x256xf32> to vector<8x256xf32>
    %22 = arith.addf %20, %21 : vector<8x256xf32>
    %c1 = arith.constant 1 : index
    %23 = memref.load %arg2[%c1] : memref<13xf32, #tpu.memory_space<smem>>
    %24 = vector.broadcast %23 : f32 to vector<8x256xf32>
    %25 = arith.mulf %24, %2 : vector<8x256xf32>
    %26 = arith.addf %22, %25 : vector<8x256xf32>
    %27 = vector.extract_strided_slice %15 {offsets = [8, 0], sizes = [8, 256], strides = [1, 1]} : vector<24x256xf32> to vector<8x256xf32>
    %28 = arith.addf %26, %27 : vector<8x256xf32>
    %c0_12 = arith.constant 0 : index
    %c0_13 = arith.constant 0 : index
    %c0_14 = arith.constant 0 : index
    %29 = vector.load %arg5[%c0_12, %c0_13, %c0_14] : memref<2x8x8xbf16, #tpu.memory_space<vmem>>, vector<1x8x8xbf16>
    %30 = vector.shape_cast %29 : vector<1x8x8xbf16> to vector<8x8xbf16>
    %31 = arith.truncf %28 : vector<8x256xf32> to vector<8x256xbf16>
    %cst_15 = arith.constant dense<0.000000e+00> : vector<8x256xf32>
    %32 = tpu.matmul %30, %31, %cst_15 {dimension_numbers = #tpu.dot_dimension_numbers<[1], [0], [0], [1], [0, 0, 1, 1], [], []>} : vector<8x8xbf16>, vector<8x256xbf16>, vector<8x256xf32> -> vector<8x256xf32>
    %c0_16 = arith.constant 0 : index
    %c0_17 = arith.constant 0 : index
    %c0_18 = arith.constant 0 : index
    %33 = vector.load %arg6[%c0_16, %c0_17, %c0_18] : memref<2x8x1xf32, #tpu.memory_space<vmem>>, vector<1x8x1xf32>
    %34 = vector.shape_cast %33 : vector<1x8x1xf32> to vector<8x1xf32>
    %35 = vector.broadcast %34 : vector<8x1xf32> to vector<8x256xf32>
    %36 = arith.addf %32, %35 : vector<8x256xf32>
    %37 = arith.negf %36 : vector<8x256xf32>
    %38 = math.exp %37 : vector<8x256xf32>
    %cst_19 = arith.constant 1.000000e+00 : f32
    %39 = vector.broadcast %cst_19 : f32 to vector<8x256xf32>
    %40 = arith.addf %39, %38 : vector<8x256xf32>
    %41 = arith.divf %39, %40 : vector<8x256xf32>
    %c5 = arith.constant 5 : index
    %42 = memref.load %arg2[%c5] : memref<13xf32, #tpu.memory_space<smem>>
    %cst_20 = arith.constant 2.000000e+00 : f32
    %43 = arith.mulf %cst_20, %42 : f32
    %c6 = arith.constant 6 : index
    %44 = memref.load %arg2[%c6] : memref<13xf32, #tpu.memory_space<smem>>
    %45 = vector.broadcast %44 : f32 to vector<8x256xf32>
    %46 = arith.mulf %45, %28 : vector<8x256xf32>
    %47 = vector.broadcast %43 : f32 to vector<8x256xf32>
    %48 = arith.addf %47, %46 : vector<8x256xf32>
    %c7 = arith.constant 7 : index
    %49 = memref.load %arg2[%c7] : memref<13xf32, #tpu.memory_space<smem>>
    %50 = vector.broadcast %49 : f32 to vector<8x256xf32>
    %51 = arith.mulf %50, %41 : vector<8x256xf32>
    %52 = arith.addf %48, %51 : vector<8x256xf32>
    %53 = arith.mulf %28, %52 : vector<8x256xf32>
    %c11 = arith.constant 11 : index
    %54 = memref.load %arg2[%c11] : memref<13xf32, #tpu.memory_space<smem>>
    %55 = vector.broadcast %54 : f32 to vector<8x256xf32>
    %56 = arith.mulf %55, %53 : vector<8x256xf32>
    %57 = arith.addf %3, %56 : vector<8x256xf32>
    %58 = tpu.concatenate %1, %2, %53 in 0 : vector<8x256xf32>, vector<8x256xf32>, vector<8x256xf32> -> vector<24x256xf32>
    %59 = arith.truncf %58 : vector<24x256xf32> to vector<24x256xbf16>
    %c1_21 = arith.constant 1 : index
    %c0_22 = arith.constant 0 : index
    %c0_23 = arith.constant 0 : index
    %60 = vector.load %arg3[%c1_21, %c0_22, %c0_23] : memref<2x24x24xbf16, #tpu.memory_space<vmem>>, vector<1x24x24xbf16>
    %61 = vector.shape_cast %60 : vector<1x24x24xbf16> to vector<24x24xbf16>
    %cst_24 = arith.constant dense<0.000000e+00> : vector<24x256xf32>
    %62 = tpu.matmul %61, %59, %cst_24 {dimension_numbers = #tpu.dot_dimension_numbers<[1], [0], [0], [1], [0, 0, 1, 1], [], []>} : vector<24x24xbf16>, vector<24x256xbf16>, vector<24x256xf32> -> vector<24x256xf32>
    %c1_25 = arith.constant 1 : index
    %c0_26 = arith.constant 0 : index
    %c0_27 = arith.constant 0 : index
    %63 = vector.load %arg4[%c1_25, %c0_26, %c0_27] : memref<2x24x1xf32, #tpu.memory_space<vmem>>, vector<1x24x1xf32>
    %64 = vector.shape_cast %63 : vector<1x24x1xf32> to vector<24x1xf32>
    %65 = vector.broadcast %64 : vector<24x1xf32> to vector<24x256xf32>
    %66 = arith.addf %62, %65 : vector<24x256xf32>
    %cst_28 = arith.constant 0.000000e+00 : f32
    %67 = vector.broadcast %cst_28 : f32 to vector<24x256xf32>
    %68 = arith.maximumf %66, %67 : vector<24x256xf32>
    %cst_29 = arith.constant 0.000000e+00 : f32
    %69 = vector.broadcast %cst_29 : f32 to vector<8x256xf32>
    %c2 = arith.constant 2 : index
    %70 = memref.load %arg2[%c2] : memref<13xf32, #tpu.memory_space<smem>>
    %71 = vector.broadcast %70 : f32 to vector<8x256xf32>
    %72 = arith.mulf %71, %1 : vector<8x256xf32>
    %73 = arith.addf %69, %72 : vector<8x256xf32>
    %74 = vector.extract_strided_slice %68 {offsets = [0, 0], sizes = [8, 256], strides = [1, 1]} : vector<24x256xf32> to vector<8x256xf32>
    %75 = arith.addf %73, %74 : vector<8x256xf32>
    %c3 = arith.constant 3 : index
    %76 = memref.load %arg2[%c3] : memref<13xf32, #tpu.memory_space<smem>>
    %77 = vector.broadcast %76 : f32 to vector<8x256xf32>
    %78 = arith.mulf %77, %2 : vector<8x256xf32>
    %79 = arith.addf %75, %78 : vector<8x256xf32>
    %80 = vector.extract_strided_slice %68 {offsets = [8, 0], sizes = [8, 256], strides = [1, 1]} : vector<24x256xf32> to vector<8x256xf32>
    %81 = arith.addf %79, %80 : vector<8x256xf32>
    %c4 = arith.constant 4 : index
    %82 = memref.load %arg2[%c4] : memref<13xf32, #tpu.memory_space<smem>>
    %83 = vector.broadcast %82 : f32 to vector<8x256xf32>
    %84 = arith.mulf %83, %53 : vector<8x256xf32>
    %85 = arith.addf %81, %84 : vector<8x256xf32>
    %86 = vector.extract_strided_slice %68 {offsets = [16, 0], sizes = [8, 256], strides = [1, 1]} : vector<24x256xf32> to vector<8x256xf32>
    %87 = arith.addf %85, %86 : vector<8x256xf32>
    %c1_30 = arith.constant 1 : index
    %c0_31 = arith.constant 0 : index
    %c0_32 = arith.constant 0 : index
    %88 = vector.load %arg5[%c1_30, %c0_31, %c0_32] : memref<2x8x8xbf16, #tpu.memory_space<vmem>>, vector<1x8x8xbf16>
    %89 = vector.shape_cast %88 : vector<1x8x8xbf16> to vector<8x8xbf16>
    %90 = arith.truncf %87 : vector<8x256xf32> to vector<8x256xbf16>
    %cst_33 = arith.constant dense<0.000000e+00> : vector<8x256xf32>
    %91 = tpu.matmul %89, %90, %cst_33 {dimension_numbers = #tpu.dot_dimension_numbers<[1], [0], [0], [1], [0, 0, 1, 1], [], []>} : vector<8x8xbf16>, vector<8x256xbf16>, vector<8x256xf32> -> vector<8x256xf32>
    %c1_34 = arith.constant 1 : index
    %c0_35 = arith.constant 0 : index
    %c0_36 = arith.constant 0 : index
    %92 = vector.load %arg6[%c1_34, %c0_35, %c0_36] : memref<2x8x1xf32, #tpu.memory_space<vmem>>, vector<1x8x1xf32>
    %93 = vector.shape_cast %92 : vector<1x8x1xf32> to vector<8x1xf32>
    %94 = vector.broadcast %93 : vector<8x1xf32> to vector<8x256xf32>
    %95 = arith.addf %91, %94 : vector<8x256xf32>
    %96 = arith.negf %95 : vector<8x256xf32>
    %97 = math.exp %96 : vector<8x256xf32>
    %cst_37 = arith.constant 1.000000e+00 : f32
    %98 = vector.broadcast %cst_37 : f32 to vector<8x256xf32>
    %99 = arith.addf %98, %97 : vector<8x256xf32>
    %100 = arith.divf %98, %99 : vector<8x256xf32>
    %c8 = arith.constant 8 : index
    %101 = memref.load %arg2[%c8] : memref<13xf32, #tpu.memory_space<smem>>
    %cst_38 = arith.constant 2.000000e+00 : f32
    %102 = arith.mulf %cst_38, %101 : f32
    %c9 = arith.constant 9 : index
    %103 = memref.load %arg2[%c9] : memref<13xf32, #tpu.memory_space<smem>>
    %104 = vector.broadcast %103 : f32 to vector<8x256xf32>
    %105 = arith.mulf %104, %87 : vector<8x256xf32>
    %106 = vector.broadcast %102 : f32 to vector<8x256xf32>
    %107 = arith.addf %106, %105 : vector<8x256xf32>
    %c10 = arith.constant 10 : index
    %108 = memref.load %arg2[%c10] : memref<13xf32, #tpu.memory_space<smem>>
    %109 = vector.broadcast %108 : f32 to vector<8x256xf32>
    %110 = arith.mulf %109, %100 : vector<8x256xf32>
    %111 = arith.addf %107, %110 : vector<8x256xf32>
    %112 = arith.mulf %87, %111 : vector<8x256xf32>
    %c12 = arith.constant 12 : index
    %113 = memref.load %arg2[%c12] : memref<13xf32, #tpu.memory_space<smem>>
    %114 = vector.broadcast %113 : f32 to vector<8x256xf32>
    %115 = arith.mulf %114, %112 : vector<8x256xf32>
    %116 = arith.addf %57, %115 : vector<8x256xf32>
    %c0_39 = arith.constant 0 : index
    %c0_40 = arith.constant 0 : index
    %117 = vector.load %arg7[%c0_39, %c0_40] : memref<8x8xbf16, #tpu.memory_space<vmem>>, vector<8x8xbf16>
    %118 = arith.truncf %116 : vector<8x256xf32> to vector<8x256xbf16>
    %cst_41 = arith.constant dense<0.000000e+00> : vector<8x256xf32>
    %119 = tpu.matmul %117, %118, %cst_41 {dimension_numbers = #tpu.dot_dimension_numbers<[1], [0], [0], [1], [0, 0, 1, 1], [], []>} : vector<8x8xbf16>, vector<8x256xbf16>, vector<8x256xf32> -> vector<8x256xf32>
    %c0_42 = arith.constant 0 : index
    %c0_43 = arith.constant 0 : index
    %120 = vector.load %arg8[%c0_42, %c0_43] : memref<8x1xf32, #tpu.memory_space<vmem>>, vector<8x1xf32>
    %121 = vector.broadcast %120 : vector<8x1xf32> to vector<8x256xf32>
    %122 = arith.addf %119, %121 : vector<8x256xf32>
    %cst_44 = arith.constant 0.000000e+00 : f32
    %123 = vector.broadcast %cst_44 : f32 to vector<8x256xf32>
    %124 = arith.maximumf %122, %123 : vector<8x256xf32>
    %125 = arith.addf %124, %1 : vector<8x256xf32>
    %c0_45 = arith.constant 0 : index
    %c0_46 = arith.constant 0 : index
    %126 = vector.load %arg9[%c0_45, %c0_46] : memref<8x128xf32, #tpu.memory_space<vmem>>, vector<8x128xf32>
    %c0_47 = arith.constant 0 : index
    %c0_48 = arith.constant 0 : index
    %127 = vector.load %arg10[%c0_47, %c0_48] : memref<8x128xf32, #tpu.memory_space<vmem>>, vector<8x128xf32>
    %128 = vector.extract_strided_slice %125 {offsets = [0, 0], sizes = [8, 128], strides = [1, 1]} : vector<8x256xf32> to vector<8x128xf32>
    %129 = vector.shape_cast %128 : vector<8x128xf32> to vector<1x8x128xf32>
    %cst_49 = arith.constant dense<0.000000e+00> : vector<1xf32>
    %130 = vector.multi_reduction <add>, %129, %cst_49 [1, 2] : vector<1x8x128xf32> to vector<1xf32>
    %131 = vector.shape_cast %130 : vector<1xf32> to vector<1x1x1xf32>
    %132 = vector.extract %131[0, 0, 0] : f32 from vector<1x1x1xf32>
    %cst_50 = arith.constant 1.024000e+03 : f32
    %133 = arith.divf %132, %cst_50 : f32
    %134 = vector.broadcast %133 : f32 to vector<8x128xf32>
    %135 = arith.subf %128, %134 : vector<8x128xf32>
    %136 = arith.mulf %135, %135 : vector<8x128xf32>
    %137 = vector.shape_cast %136 : vector<8x128xf32> to vector<1x8x128xf32>
    %cst_51 = arith.constant dense<0.000000e+00> : vector<1xf32>
    %138 = vector.multi_reduction <add>, %137, %cst_51 [1, 2] : vector<1x8x128xf32> to vector<1xf32>
    %139 = vector.shape_cast %138 : vector<1xf32> to vector<1x1x1xf32>
    %140 = vector.extract %139[0, 0, 0] : f32 from vector<1x1x1xf32>
    %cst_52 = arith.constant 1.024000e+03 : f32
    %141 = arith.divf %140, %cst_52 : f32
    %142 = vector.broadcast %133 : f32 to vector<8x128xf32>
    %143 = arith.subf %128, %142 : vector<8x128xf32>
    %cst_53 = arith.constant 9.99999974E-6 : f32
    %144 = arith.addf %141, %cst_53 : f32
    %145 = math.rsqrt %144 : f32
    %146 = vector.broadcast %145 : f32 to vector<8x128xf32>
    %147 = arith.mulf %143, %146 : vector<8x128xf32>
    %148 = arith.mulf %147, %126 : vector<8x128xf32>
    %149 = arith.addf %148, %127 : vector<8x128xf32>
    %c0_54 = arith.constant 0 : index
    %c0_55 = arith.constant 0 : index
    %150 = vector.load %arg11[%c0_54, %c0_55] : memref<8x256xf32, #tpu.memory_space<vmem>>, vector<8x128xf32>
    tpu.vector_store %arg11[%c0_54, %c0_55], %149 {strides = array<i32>} : memref<8x256xf32, #tpu.memory_space<vmem>>, vector<8x128xf32>,
    %151 = vector.extract_strided_slice %125 {offsets = [0, 128], sizes = [8, 128], strides = [1, 1]} : vector<8x256xf32> to vector<8x128xf32>
    %152 = vector.shape_cast %151 : vector<8x128xf32> to vector<1x8x128xf32>
    %cst_56 = arith.constant dense<0.000000e+00> : vector<1xf32>
    %153 = vector.multi_reduction <add>, %152, %cst_56 [1, 2] : vector<1x8x128xf32> to vector<1xf32>
    %154 = vector.shape_cast %153 : vector<1xf32> to vector<1x1x1xf32>
    %155 = vector.extract %154[0, 0, 0] : f32 from vector<1x1x1xf32>
    %cst_57 = arith.constant 1.024000e+03 : f32
    %156 = arith.divf %155, %cst_57 : f32
    %157 = vector.broadcast %156 : f32 to vector<8x128xf32>
    %158 = arith.subf %151, %157 : vector<8x128xf32>
    %159 = arith.mulf %158, %158 : vector<8x128xf32>
    %160 = vector.shape_cast %159 : vector<8x128xf32> to vector<1x8x128xf32>
    %cst_58 = arith.constant dense<0.000000e+00> : vector<1xf32>
    %161 = vector.multi_reduction <add>, %160, %cst_58 [1, 2] : vector<1x8x128xf32> to vector<1xf32>
    %162 = vector.shape_cast %161 : vector<1xf32> to vector<1x1x1xf32>
    %163 = vector.extract %162[0, 0, 0] : f32 from vector<1x1x1xf32>
    %cst_59 = arith.constant 1.024000e+03 : f32
    %164 = arith.divf %163, %cst_59 : f32
    %165 = vector.broadcast %156 : f32 to vector<8x128xf32>
    %166 = arith.subf %151, %165 : vector<8x128xf32>
    %cst_60 = arith.constant 9.99999974E-6 : f32
    %167 = arith.addf %164, %cst_60 : f32
    %168 = math.rsqrt %167 : f32
    %169 = vector.broadcast %168 : f32 to vector<8x128xf32>
    %170 = arith.mulf %166, %169 : vector<8x128xf32>
    %171 = arith.mulf %170, %126 : vector<8x128xf32>
    %172 = arith.addf %171, %127 : vector<8x128xf32>
    %c0_61 = arith.constant 0 : index
    %c128 = arith.constant 128 : index
    %173 = vector.load %arg11[%c0_61, %c128] : memref<8x256xf32, #tpu.memory_space<vmem>>, vector<8x128xf32>
    tpu.vector_store %arg11[%c0_61, %c128], %172 {strides = array<i32>} : memref<8x256xf32, #tpu.memory_space<vmem>>, vector<8x128xf32>,
    return
  }
  func.func @transform_0(%arg0: i32) -> (i32, i32) {
    %c0_i32 = arith.constant 0 : i32
    %c0_i32_0 = arith.constant 0 : i32
    return %c0_i32, %arg0 : i32, i32
  }
  func.func @transform_1(%arg0: i32) -> i32 {
    %c0_i32 = arith.constant 0 : i32
    %c0_i32_0 = arith.constant 0 : i32
    return %c0_i32 : i32
  }
  func.func @transform_2(%arg0: i32) -> (i32, i32, i32) {
    %c0_i32 = arith.constant 0 : i32
    %c0_i32_0 = arith.constant 0 : i32
    %c0_i32_1 = arith.constant 0 : i32
    %c0_i32_2 = arith.constant 0 : i32
    return %c0_i32, %c0_i32_0, %c0_i32_1 : i32, i32, i32
  }
  func.func @transform_3(%arg0: i32) -> (i32, i32, i32) {
    %c0_i32 = arith.constant 0 : i32
    %c0_i32_0 = arith.constant 0 : i32
    %c0_i32_1 = arith.constant 0 : i32
    %c0_i32_2 = arith.constant 0 : i32
    return %c0_i32, %c0_i32_0, %c0_i32_1 : i32, i32, i32
  }
  func.func @transform_4(%arg0: i32) -> (i32, i32, i32) {
    %c0_i32 = arith.constant 0 : i32
    %c0_i32_0 = arith.constant 0 : i32
    %c0_i32_1 = arith.constant 0 : i32
    %c0_i32_2 = arith.constant 0 : i32
    return %c0_i32, %c0_i32_0, %c0_i32_1 : i32, i32, i32
  }
  func.func @transform_5(%arg0: i32) -> (i32, i32, i32) {
    %c0_i32 = arith.constant 0 : i32
    %c0_i32_0 = arith.constant 0 : i32
    %c0_i32_1 = arith.constant 0 : i32
    %c0_i32_2 = arith.constant 0 : i32
    return %c0_i32, %c0_i32_0, %c0_i32_1 : i32, i32, i32
  }
  func.func @transform_6(%arg0: i32) -> (i32, i32) {
    %c0_i32 = arith.constant 0 : i32
    %c0_i32_0 = arith.constant 0 : i32
    %c0_i32_1 = arith.constant 0 : i32
    return %c0_i32, %c0_i32_0 : i32, i32
  }
  func.func @transform_7(%arg0: i32) -> (i32, i32) {
    %c0_i32 = arith.constant 0 : i32
    %c0_i32_0 = arith.constant 0 : i32
    %c0_i32_1 = arith.constant 0 : i32
    return %c0_i32, %c0_i32_0 : i32, i32
  }
  func.func @transform_8(%arg0: i32) -> (i32, i32) {
    %c0_i32 = arith.constant 0 : i32
    %c0_i32_0 = arith.constant 0 : i32
    %c0_i32_1 = arith.constant 0 : i32
    return %c0_i32, %c0_i32_0 : i32, i32
  }
  func.func @transform_9(%arg0: i32) -> (i32, i32) {
    %c0_i32 = arith.constant 0 : i32
    %c0_i32_0 = arith.constant 0 : i32
    %c0_i32_1 = arith.constant 0 : i32
    return %c0_i32, %c0_i32_0 : i32, i32
  }
  func.func @transform_10(%arg0: i32) -> (i32, i32) {
    %c0_i32 = arith.constant 0 : i32
    %c0_i32_0 = arith.constant 0 : i32
    return %c0_i32, %arg0 : i32, i32
  }
}

</mosaic_0001>

<llo_original>
// kernel: tpu_custom_call.1
$region0: #{tpu_custom_call.1}
  #allocation0 [shape = 'u32[]', space=smem, size = 0x4, offset = 0x4, fixed_abs, tag = 'smem constant byte address 0x4 - core index']
  #allocation1 [shape = 'u32[144,128]{1,0:T(1,128)}', space=vmem, size = 0x12000, scoped, tag = 'internal scratch']
  %s0 = inlined_call_operand.vmem [shape: f32[16,256], index: 0, kind: input, shape index: {}]
  %s1 = inlined_call_operand.hbm [shape: f32[13], index: 1, kind: input, shape index: {}]
  %s2 = inlined_call_operand.vmem [shape: bf16[2,24,24], index: 2, kind: input, shape index: {}]
  %s3 = inlined_call_operand.vmem [shape: f32[2,24,1], index: 3, kind: input, shape index: {}]
  %s4 = inlined_call_operand.vmem [shape: bf16[2,8,8], index: 4, kind: input, shape index: {}]
  %s5 = inlined_call_operand.vmem [shape: f32[2,8,1], index: 5, kind: input, shape index: {}]
  %s6 = inlined_call_operand.vmem [shape: bf16[8,8], index: 6, kind: input, shape index: {}]
  %s7 = inlined_call_operand.vmem [shape: f32[8,1], index: 7, kind: input, shape index: {}]
  %s8 = inlined_call_operand.vmem [shape: f32[8,128], index: 8, kind: input, shape index: {}]
  %s9 = inlined_call_operand.vmem [shape: f32[8,128], index: 9, kind: input, shape index: {}]
  %s10 = inlined_call_operand.hbm [shape: f32[8,256], index: 10, kind: output, shape index: {}]
  %s11 = sld [smem:[#allocation0]]
  $region54: #{tpu_custom_call.1} parent=0
    _
  %s13 = ssub.s32 1, %s11
  %s14 = scalar_select 0, %s13, %s11
  $region1: #{tpu_custom_call.1} parent=0
    #allocation2 [shape = 'u8[512]{0}', space=smem, size = 0x200, scoped, tag = 'input window, operand 1, single buffered']
    #allocation3 [shape = 's32[1]{0}', space=sflag, size = 0x4, scoped, tag = 'scoped memory for tpu_custom_call.1']
    #allocation4 [shape = 's32[1]{0}', space=sflag, size = 0x4, scoped, tag = 'scoped memory for tpu_custom_call.1']
    #allocation5 [shape = 'u8[8192]{0}', space=vmem, size = 0x2000, scoped, tag = 'output window, operand 0, single buffered']
    %15 = vsyncpa [#allocation4], 0
    %16 = vsyncpa [#allocation3], 0
    // Predicated region
    $region2: #{tpu_custom_call.1} parent=1 // pred_check
      _
    $region3: #{tpu_custom_call.1} parent=1 // pred_check_branch
      %18 = sbr.rel (0) target = $region5
    $region4: #{tpu_custom_call.1} parent=1 // pred_region
      _
    $region5: #{tpu_custom_call.1} parent=1 // pred_fallthru
      _
    // Predicated region
    $region6: #{tpu_custom_call.1} parent=1 // pred_check
      _
    $region7: #{tpu_custom_call.1} parent=1 // pred_check_branch
      %20 = sbr.rel (0) target = $region9
    $region8: #{tpu_custom_call.1} parent=1 // pred_region
      %s22 = ssub.s32 16, 16
      %23 = vsyncadd [#allocation4], %s22
      %26 = dma.hbm_to_smem %s1, 16, [#allocation2], [#allocation4]
    $region9: #{tpu_custom_call.1} parent=1 // pred_fallthru
      _
    // Predicated region
    $region10: #{tpu_custom_call.1} parent=1 // pred_check
      _
    $region11: #{tpu_custom_call.1} parent=1 // pred_check_branch
      %28 = sbr.rel (0) target = $region13
    $region12: #{tpu_custom_call.1} parent=1 // pred_region
      _
    $region13: #{tpu_custom_call.1} parent=1 // pred_fallthru
      _
    // Predicated region
    $region14: #{tpu_custom_call.1} parent=1 // pred_check
      _
    $region15: #{tpu_custom_call.1} parent=1 // pred_check_branch
      %30 = sbr.rel (0) target = $region17
    $region16: #{tpu_custom_call.1} parent=1 // pred_region
      _
    $region17: #{tpu_custom_call.1} parent=1 // pred_fallthru
      _
    // Predicated region
    $region18: #{tpu_custom_call.1} parent=1 // pred_check
      _
    $region19: #{tpu_custom_call.1} parent=1 // pred_check_branch
      %32 = sbr.rel (0) target = $region21
    $region20: #{tpu_custom_call.1} parent=1 // pred_region
      _
    $region21: #{tpu_custom_call.1} parent=1 // pred_fallthru
      _
    // Predicated region
    $region22: #{tpu_custom_call.1} parent=1 // pred_check
      _
    $region23: #{tpu_custom_call.1} parent=1 // pred_check_branch
      %34 = sbr.rel (0) target = $region25
    $region24: #{tpu_custom_call.1} parent=1 // pred_region
      _
    $region25: #{tpu_custom_call.1} parent=1 // pred_fallthru
      _
    // Predicated region
    $region26: #{tpu_custom_call.1} parent=1 // pred_check
      _
    $region27: #{tpu_custom_call.1} parent=1 // pred_check_branch
      %36 = sbr.rel (0) target = $region29
    $region28: #{tpu_custom_call.1} parent=1 // pred_region
      _
    $region29: #{tpu_custom_call.1} parent=1 // pred_fallthru
      _
    // Predicated region
    $region30: #{tpu_custom_call.1} parent=1 // pred_check
      _
    $region31: #{tpu_custom_call.1} parent=1 // pred_check_branch
      %38 = sbr.rel (0) target = $region33
    $region32: #{tpu_custom_call.1} parent=1 // pred_region
      _
    $region33: #{tpu_custom_call.1} parent=1 // pred_fallthru
      _
    // Predicated region
    $region34: #{tpu_custom_call.1} parent=1 // pred_check
      _
    $region35: #{tpu_custom_call.1} parent=1 // pred_check_branch
      %40 = sbr.rel (0) target = $region37
    $region36: #{tpu_custom_call.1} parent=1 // pred_region
      _
    $region37: #{tpu_custom_call.1} parent=1 // pred_fallthru
      _
    // Predicated region
    $region38: #{tpu_custom_call.1} parent=1 // pred_check
      _
    $region39: #{tpu_custom_call.1} parent=1 // pred_check_branch
      %42 = sbr.rel (0) target = $region41
    $region40: #{tpu_custom_call.1} parent=1 // pred_region
      _
    $region41: #{tpu_custom_call.1} parent=1 // pred_fallthru
      _
    // Predicated region
    $region42: #{tpu_custom_call.1} parent=1 // pred_check
      _
    $region43: #{tpu_custom_call.1} parent=1 // pred_check_branch
      %44 = sbr.rel (0) target = $region45
    $region44: #{tpu_custom_call.1} parent=1 // pred_region
      %45 = dma.done [#allocation4], 16
    $region45: #{tpu_custom_call.1} parent=1 // pred_fallthru
      _
    %46 = sfence
    %v48 = vld [vmem:[%s0] sm:$0xff]
    %v49 = vld [vmem:[%s0 + $0x8] sm:$0xff]
    %v50 = vld [vmem:[%s0 + $0x10] sm:$0xff]
    %v51 = vld [vmem:[%s0 + $0x18] sm:$0xff]
    %v52 = vpack.c.bf16 %v50, %v48
    %v53 = vpack.c.bf16 %v51, %v49
    %v54 = vpack.c.bf16 0.0, 0.0
    %v55 = vld [vmem:[%s2] sm:$0xf]
    %v56 = vld [vmem:[%s2 + $0x4] sm:$0xf]
    %v57 = vld [vmem:[%s2 + $0x8] sm:$0xf]
    %v58 = vld [vmem:[%s3] sm:$0xff]
    %v59 = vld [vmem:[%s3 + $0x8] sm:$0xff]
    %v60 = vld [vmem:[%s3 + $0x10] sm:$0xff]
    %62 = vset.pattern.permute.xlu0 0
    %63 = vperm.xlu0 %62, %v58
    %v64 = vpop.permute.xlu0 %63
    %67 = vset.pattern.permute.xlu0 0
    %68 = vperm.xlu0 %67, %v59
    %v69 = vpop.permute.xlu0 %68
    %72 = vset.pattern.permute.xlu0 0
    %73 = vperm.xlu0 %72, %v60
    %v74 = vpop.permute.xlu0 %73
    %v78 = vunpack.c.l.b16 %v55
    %v79 = vunpack.c.l.b16 %v56
    %v80 = vunpack.c.l.b16 %v57
    %v81 = vpack.c.b16 %v79, %v78
    %v82 = vpack.c.b16 %v80, %v80
    %vm83 = vcmask 195584
    %v85 = vsel %vm83, %v81, 0
    %v88 = vsel %vm83, %v82, 0
    %vm90 = vcmask 1043456
    %v92 = vsel %vm90, %v54, 0
    %94 = vmatprep.subr.bf16.mxu0 %v53
    %95 = vmatpush1.bf16.msra.mxu0 %v52
    %96 = vmatprep.subr.bf16.mxu0 %v92
    %97 = vmatpush1.bf16.msra.mxu0 %v92
    %98 = vmatprep.subr.bf16.mxu0 0
    %99 = vmatpush1.bf16.msra.mxu0 0
    %100 = vmatprep.subr.bf16.mxu0 0
    %101 = vmatpush1.bf16.msra.mxu0 0
    %102 = vmatprep.subr.bf16.mxu0 0
    %103 = vmatpush1.bf16.msra.mxu0 0
    %104 = vmatprep.subr.bf16.mxu0 0
    %105 = vmatpush1.bf16.msra.mxu0 0
    %106 = vmatprep.subr.bf16.mxu0 0
    %107 = vmatpush1.bf16.msra.mxu0 0
    %108 = vmatprep.subr.bf16.mxu0 0
    %109 = vmatpush1.bf16.msra.mxu0 0
    %110 = vmatprep.subr.bf16.mxu0 0
    %111 = vmatpush1.bf16.msra.mxu0 0
    %112 = vmatprep.subr.bf16.mxu0 0
    %113 = vmatpush1.bf16.msra.mxu0 0
    %114 = vmatprep.subr.bf16.mxu0 0
    %115 = vmatpush1.bf16.msra.mxu0 0
    %116 = vmatprep.subr.bf16.mxu0 0
    %117 = vmatpush1.bf16.msra.mxu0 0
    %118 = vmatprep.subr.bf16.mxu0 0
    %119 = vmatpush1.bf16.msra.mxu0 0
    %120 = vmatprep.subr.bf16.mxu0 0
    %121 = vmatpush1.bf16.msra.mxu0 0
    %122 = vmatprep.subr.bf16.mxu0 0
    %123 = vmatpush1.bf16.msra.mxu0 0
    %124 = vmatprep.subr.bf16.mxu0 0
    %125 = vmatpush1.bf16.msra.mxu0 0
    %126 = vmatprep.mubr.bf16.mxu0 0
    %127 = vmatmul.mubr.bf16.gmra.mrb[0].mxu0 %v85
    %v128 = vpop.f32.mrb[0].mxu0
    %v129 = vadd.f32 %v64, %v128
    %v130 = vpop.f32.mrb[0].mxu0
    %v131 = vadd.f32 %v64, %v130
    %v132 = vpop.f32.mrb[0].mxu0
    %v133 = vadd.f32 %v69, %v132
    %v134 = vpop.f32.mrb[0].mxu0
    %v135 = vadd.f32 %v69, %v134
    %136 = vmatprep.mubr.bf16.mxu0 0
    %137 = vmatmul.mubr.bf16.gmra.mrb[0].mxu0 %v88
    %v138 = vpop.f32.mrb[0].mxu0
    %v139 = vpop.f32.mrb[0].mxu0
    %v140 = vpop.f32.mrb[0].mxu0
    %v141 = vpop.f32.mrb[0].mxu0
    %142 = vdwg.mxu0
    %v143 = vmax.f32 %v129, 0.0
    %v144 = vmax.f32 %v131, 0.0
    %v145 = vmax.f32 %v133, 0.0
    %v146 = vmax.f32 %v135, 0.0
    %s147 = sld [smem:[#allocation2]]
    %v148 = vstv %s147
    %v149 = vmul.f32 %v148, %v48
    %v150 = vmul.f32 %v148, %v49
    %v151 = vadd.f32 %v149, 0.0
    %v152 = vadd.f32 %v150, 0.0
    %v153 = vadd.f32 %v151, %v143
    %v154 = vadd.f32 %v152, %v144
    %s155 = sld [smem:[#allocation2 + $0x1]]
    %v156 = vstv %s155
    %v157 = vmul.f32 %v156, %v50
    %v158 = vmul.f32 %v156, %v51
    %v159 = vadd.f32 %v153, %v157
    %v160 = vadd.f32 %v154, %v158
    %v161 = vadd.f32 %v159, %v145
    %v162 = vadd.f32 %v160, %v146
    %v163 = vld [vmem:[%s4] sm:$0xf]
    %v164 = vpack.c.bf16 %v161, %v161
    %v165 = vpack.c.bf16 %v162, %v162
    %v166 = vld [vmem:[%s5] sm:$0xff]
    %168 = vset.pattern.permute.xlu0 0
    %169 = vperm.xlu0 %168, %v166
    %v170 = vpop.permute.xlu0 %169
    %vm172 = vcmask 64512
    %v174 = vsel %vm172, %v163, 0
    %v177 = vsel %vm90, %v164, 0
    %v180 = vsel %vm90, %v165, 0
    %182 = vmatprep.subr.bf16.mxu0 %v180
    %183 = vmatpush1.bf16.msra.mxu0 %v177
    %184 = vmatprep.subr.bf16.mxu0 0
    %185 = vmatpush1.bf16.msra.mxu0 0
    %186 = vmatprep.subr.bf16.mxu0 0
    %187 = vmatpush1.bf16.msra.mxu0 0
    %188 = vmatprep.subr.bf16.mxu0 0
    %189 = vmatpush1.bf16.msra.mxu0 0
    %190 = vmatprep.subr.bf16.mxu0 0
    %191 = vmatpush1.bf16.msra.mxu0 0
    %192 = vmatprep.subr.bf16.mxu0 0
    %193 = vmatpush1.bf16.msra.mxu0 0
    %194 = vmatprep.subr.bf16.mxu0 0
    %195 = vmatpush1.bf16.msra.mxu0 0
    %196 = vmatprep.subr.bf16.mxu0 0
    %197 = vmatpush1.bf16.msra.mxu0 0
    %198 = vmatprep.subr.bf16.mxu0 0
    %199 = vmatpush1.bf16.msra.mxu0 0
    %200 = vmatprep.subr.bf16.mxu0 0
    %201 = vmatpush1.bf16.msra.mxu0 0
    %202 = vmatprep.subr.bf16.mxu0 0
    %203 = vmatpush1.bf16.msra.mxu0 0
    %204 = vmatprep.subr.bf16.mxu0 0
    %205 = vmatpush1.bf16.msra.mxu0 0
    %206 = vmatprep.subr.bf16.mxu0 0
    %207 = vmatpush1.bf16.msra.mxu0 0
    %208 = vmatprep.subr.bf16.mxu0 0
    %209 = vmatpush1.bf16.msra.mxu0 0
    %210 = vmatprep.subr.bf16.mxu0 0
    %211 = vmatpush1.bf16.msra.mxu0 0
    %212 = vmatprep.subr.bf16.mxu0 0
    %213 = vmatpush1.bf16.msra.mxu0 0
    %214 = vmatprep.mubr.bf16.mxu0 0
    %215 = vmatmul.mubr.bf16.gmra.mrb[0].mxu0 %v174
    %v216 = vpop.f32.mrb[0].mxu0
    %v217 = vadd.f32 %v170, %v216
    %v218 = vpop.f32.mrb[0].mxu0
    %v219 = vadd.f32 %v170, %v218
    %v220 = vpop.f32.mrb[0].mxu0
    %v221 = vpop.f32.mrb[0].mxu0
    %222 = vdwg.mxu0
    %v223 = vxor.u32 %v217, 2147483648
    %v224 = vxor.u32 %v219, 2147483648
    %v225 = vmul.f32 %v223, 1.442695
    %v226 = vpow.pop %v225
    %v227 = vmul.f32 %v224, 1.442695
    %v228 = vpow.pop %v227
    %v229 = vadd.f32 %v226, 1.0
    %v230 = vadd.f32 %v228, 1.0
    %v231 = vrcp.pop %v229
    %v232 = vmul.f32 1.0, %v231
    %v233 = vrcp.pop %v230
    %v234 = vmul.f32 1.0, %v233
    %s235 = sld [smem:[#allocation2 + $0x5]]
    %s236 = smul.f32 %s235, 2.0
    %s237 = sld [smem:[#allocation2 + $0x6]]
    %v238 = vstv %s237
    %v239 = vmul.f32 %v238, %v161
    %v240 = vmul.f32 %v238, %v162
    %v241 = vstv %s236
    %v242 = vadd.f32 %v241, %v239
    %v243 = vadd.f32 %v241, %v240
    %s244 = sld [smem:[#allocation2 + $0x7]]
    %v245 = vstv %s244
    %v246 = vmul.f32 %v245, %v232
    %v247 = vmul.f32 %v245, %v234
    %v248 = vadd.f32 %v242, %v246
    %v249 = vadd.f32 %v243, %v247
    %v250 = vmul.f32 %v161, %v248
    %v251 = vmul.f32 %v162, %v249
    %s252 = sld [smem:[#allocation2 + $0xb]]
    %v253 = vstv %s252
    %v254 = vmul.f32 %v253, %v250
    %v255 = vmul.f32 %v253, %v251
    %v256 = vadd.f32 %v254, 0.0
    %v257 = vadd.f32 %v255, 0.0
    %v258 = vpack.c.bf16 %v250, %v250
    %v259 = vpack.c.bf16 %v251, %v251
    %s260 = scalar_lea.vmem %s2, 12
    %v261 = vld [vmem:[%s260] sm:$0xf]
    %v262 = vld [vmem:[%s260 + $0x4] sm:$0xf]
    %v263 = vld [vmem:[%s260 + $0x8] sm:$0xf]
    %s264 = scalar_lea.vmem %s3, 24
    %v265 = vld [vmem:[%s264] sm:$0xff]
    %v266 = vld [vmem:[%s264 + $0x8] sm:$0xff]
    %v267 = vld [vmem:[%s264 + $0x10] sm:$0xff]
    %269 = vset.pattern.permute.xlu0 0
    %270 = vperm.xlu0 %269, %v265
    %v271 = vpop.permute.xlu0 %270
    %274 = vset.pattern.permute.xlu0 0
    %275 = vperm.xlu0 %274, %v266
    %v276 = vpop.permute.xlu0 %275
    %279 = vset.pattern.permute.xlu0 0
    %280 = vperm.xlu0 %279, %v267
    %v281 = vpop.permute.xlu0 %280
    %v286 = vunpack.c.l.b16 %v261
    %v287 = vunpack.c.l.b16 %v262
    %v288 = vunpack.c.l.b16 %v263
    %v289 = vpack.c.b16 %v287, %v286
    %v290 = vpack.c.b16 %v288, %v288
    %v292 = vsel %vm83, %v289, 0
    %v295 = vsel %vm83, %v290, 0
    %v298 = vsel %vm90, %v258, 0
    %v301 = vsel %vm90, %v259, 0
    %303 = vmatprep.subr.bf16.mxu0 %v53
    %304 = vmatpush1.bf16.msra.mxu0 %v52
    %305 = vmatprep.subr.bf16.mxu0 %v301
    %306 = vmatpush1.bf16.msra.mxu0 %v298
    %307 = vmatprep.subr.bf16.mxu0 0
    %308 = vmatpush1.bf16.msra.mxu0 0
    %309 = vmatprep.subr.bf16.mxu0 0
    %310 = vmatpush1.bf16.msra.mxu0 0
    %311 = vmatprep.subr.bf16.mxu0 0
    %312 = vmatpush1.bf16.msra.mxu0 0
    %313 = vmatprep.subr.bf16.mxu0 0
    %314 = vmatpush1.bf16.msra.mxu0 0
    %315 = vmatprep.subr.bf16.mxu0 0
    %316 = vmatpush1.bf16.msra.mxu0 0
    %317 = vmatprep.subr.bf16.mxu0 0
    %318 = vmatpush1.bf16.msra.mxu0 0
    %319 = vmatprep.subr.bf16.mxu0 0
    %320 = vmatpush1.bf16.msra.mxu0 0
    %321 = vmatprep.subr.bf16.mxu0 0
    %322 = vmatpush1.bf16.msra.mxu0 0
    %323 = vmatprep.subr.bf16.mxu0 0
    %324 = vmatpush1.bf16.msra.mxu0 0
    %325 = vmatprep.subr.bf16.mxu0 0
    %326 = vmatpush1.bf16.msra.mxu0 0
    %327 = vmatprep.subr.bf16.mxu0 0
    %328 = vmatpush1.bf16.msra.mxu0 0
    %329 = vmatprep.subr.bf16.mxu0 0
    %330 = vmatpush1.bf16.msra.mxu0 0
    %331 = vmatprep.subr.bf16.mxu0 0
    %332 = vmatpush1.bf16.msra.mxu0 0
    %333 = vmatprep.subr.bf16.mxu0 0
    %334 = vmatpush1.bf16.msra.mxu0 0
    %335 = vmatprep.mubr.bf16.mxu0 0
    %336 = vmatmul.mubr.bf16.gmra.mrb[0].mxu0 %v292
    %v337 = vpop.f32.mrb[0].mxu0
    %v338 = vadd.f32 %v271, %v337
    %v339 = vpop.f32.mrb[0].mxu0
    %v340 = vadd.f32 %v271, %v339
    %v341 = vpop.f32.mrb[0].mxu0
    %v342 = vadd.f32 %v276, %v341
    %v343 = vpop.f32.mrb[0].mxu0
    %v344 = vadd.f32 %v276, %v343
    %345 = vmatprep.mubr.bf16.mxu0 0
    %346 = vmatmul.mubr.bf16.gmra.mrb[0].mxu0 %v295
    %v347 = vpop.f32.mrb[0].mxu0
    %v348 = vadd.f32 %v281, %v347
    %v349 = vpop.f32.mrb[0].mxu0
    %v350 = vadd.f32 %v281, %v349
    %v351 = vpop.f32.mrb[0].mxu0
    %v352 = vpop.f32.mrb[0].mxu0
    %353 = vdwg.mxu0
    %v354 = vmax.f32 %v338, 0.0
    %v355 = vmax.f32 %v340, 0.0
    %v356 = vmax.f32 %v342, 0.0
    %v357 = vmax.f32 %v344, 0.0
    %v358 = vmax.f32 %v348, 0.0
    %v359 = vmax.f32 %v350, 0.0
    %s360 = sld [smem:[#allocation2 + $0x2]]
    %v361 = vstv %s360
    %v362 = vmul.f32 %v361, %v48
    %v363 = vmul.f32 %v361, %v49
    %v364 = vadd.f32 %v362, 0.0
    %v365 = vadd.f32 %v363, 0.0
    %v366 = vadd.f32 %v364, %v354
    %v367 = vadd.f32 %v365, %v355
    %s368 = sld [smem:[#allocation2 + $0x3]]
    %v369 = vstv %s368
    %v370 = vmul.f32 %v369, %v50
    %v371 = vmul.f32 %v369, %v51
    %v372 = vadd.f32 %v366, %v370
    %v373 = vadd.f32 %v367, %v371
    %v374 = vadd.f32 %v372, %v356
    %v375 = vadd.f32 %v373, %v357
    %s376 = sld [smem:[#allocation2 + $0x4]]
    %v377 = vstv %s376
    %v378 = vmul.f32 %v377, %v250
    %v379 = vmul.f32 %v377, %v251
    %v380 = vadd.f32 %v374, %v378
    %v381 = vadd.f32 %v375, %v379
    %v382 = vadd.f32 %v380, %v358
    %v383 = vadd.f32 %v381, %v359
    %s384 = scalar_lea.vmem %s4, 4
    %v385 = vld [vmem:[%s384] sm:$0xf]
    %v386 = vpack.c.bf16 %v382, %v382
    %v387 = vpack.c.bf16 %v383, %v383
    %s388 = scalar_lea.vmem %s5, 8
    %v389 = vld [vmem:[%s388] sm:$0xff]
    %391 = vset.pattern.permute.xlu0 0
    %392 = vperm.xlu0 %391, %v389
    %v393 = vpop.permute.xlu0 %392
    %v396 = vsel %vm172, %v385, 0
    %v399 = vsel %vm90, %v386, 0
    %v402 = vsel %vm90, %v387, 0
    %404 = vmatprep.subr.bf16.mxu0 %v402
    %405 = vmatpush1.bf16.msra.mxu0 %v399
    %406 = vmatprep.subr.bf16.mxu0 0
    %407 = vmatpush1.bf16.msra.mxu0 0
    %408 = vmatprep.subr.bf16.mxu0 0
    %409 = vmatpush1.bf16.msra.mxu0 0
    %410 = vmatprep.subr.bf16.mxu0 0
    %411 = vmatpush1.bf16.msra.mxu0 0
    %412 = vmatprep.subr.bf16.mxu0 0
    %413 = vmatpush1.bf16.msra.mxu0 0
    %414 = vmatprep.subr.bf16.mxu0 0
    %415 = vmatpush1.bf16.msra.mxu0 0
    %416 = vmatprep.subr.bf16.mxu0 0
    %417 = vmatpush1.bf16.msra.mxu0 0
    %418 = vmatprep.subr.bf16.mxu0 0
    %419 = vmatpush1.bf16.msra.mxu0 0
    %420 = vmatprep.subr.bf16.mxu0 0
    %421 = vmatpush1.bf16.msra.mxu0 0
    %422 = vmatprep.subr.bf16.mxu0 0
    %423 = vmatpush1.bf16.msra.mxu0 0
    %424 = vmatprep.subr.bf16.mxu0 0
    %425 = vmatpush1.bf16.msra.mxu0 0
    %426 = vmatprep.subr.bf16.mxu0 0
    %427 = vmatpush1.bf16.msra.mxu0 0
    %428 = vmatprep.subr.bf16.mxu0 0
    %429 = vmatpush1.bf16.msra.mxu0 0
    %430 = vmatprep.subr.bf16.mxu0 0
    %431 = vmatpush1.bf16.msra.mxu0 0
    %432 = vmatprep.subr.bf16.mxu0 0
    %433 = vmatpush1.bf16.msra.mxu0 0
    %434 = vmatprep.subr.bf16.mxu0 0
    %435 = vmatpush1.bf16.msra.mxu0 0
    %436 = vmatprep.mubr.bf16.mxu0 0
    %437 = vmatmul.mubr.bf16.gmra.mrb[0].mxu0 %v396
    %v438 = vpop.f32.mrb[0].mxu0
    %v439 = vadd.f32 %v393, %v438
    %v440 = vpop.f32.mrb[0].mxu0
    %v441 = vadd.f32 %v393, %v440
    %v442 = vpop.f32.mrb[0].mxu0
    %v443 = vpop.f32.mrb[0].mxu0
    %444 = vdwg.mxu0
    %v445 = vxor.u32 %v439, 2147483648
    %v446 = vxor.u32 %v441, 2147483648
    %v447 = vmul.f32 %v445, 1.442695
    %v448 = vpow.pop %v447
    %v449 = vmul.f32 %v446, 1.442695
    %v450 = vpow.pop %v449
    %v451 = vadd.f32 %v448, 1.0
    %v452 = vadd.f32 %v450, 1.0
    %v453 = vrcp.pop %v451
    %v454 = vmul.f32 1.0, %v453
    %v455 = vrcp.pop %v452
    %v456 = vmul.f32 1.0, %v455
    %s457 = sld [smem:[#allocation2 + $0x8]]
    %s458 = smul.f32 %s457, 2.0
    %s459 = sld [smem:[#allocation2 + $0x9]]
    %v460 = vstv %s459
    %v461 = vmul.f32 %v460, %v382
    %v462 = vmul.f32 %v460, %v383
    %v463 = vstv %s458
    %v464 = vadd.f32 %v463, %v461
    %v465 = vadd.f32 %v463, %v462
    %s466 = sld [smem:[#allocation2 + $0xa]]
    %v467 = vstv %s466
    %v468 = vmul.f32 %v467, %v454
    %v469 = vmul.f32 %v467, %v456
    %v470 = vadd.f32 %v464, %v468
    %v471 = vadd.f32 %v465, %v469
    %v472 = vmul.f32 %v382, %v470
    %v473 = vmul.f32 %v383, %v471
    %s474 = sld [smem:[#allocation2 + $0xc]]
    %v475 = vstv %s474
    %v476 = vmul.f32 %v475, %v472
    %v477 = vmul.f32 %v475, %v473
    %v478 = vadd.f32 %v256, %v476
    %v479 = vadd.f32 %v257, %v477
    %v480 = vld [vmem:[%s6] sm:$0xf]
    %v481 = vpack.c.bf16 %v478, %v478
    %v482 = vpack.c.bf16 %v479, %v479
    %v483 = vld [vmem:[%s7] sm:$0xff]
    %485 = vset.pattern.permute.xlu0 0
    %486 = vperm.xlu0 %485, %v483
    %v487 = vpop.permute.xlu0 %486
    %v490 = vsel %vm172, %v480, 0
    %v493 = vsel %vm90, %v481, 0
    %v496 = vsel %vm90, %v482, 0
    %498 = vmatprep.subr.bf16.mxu0 %v496
    %499 = vmatpush1.bf16.msra.mxu0 %v493
    %500 = vmatprep.subr.bf16.mxu0 0
    %501 = vmatpush1.bf16.msra.mxu0 0
    %502 = vmatprep.subr.bf16.mxu0 0
    %503 = vmatpush1.bf16.msra.mxu0 0
    %504 = vmatprep.subr.bf16.mxu0 0
    %505 = vmatpush1.bf16.msra.mxu0 0
    %506 = vmatprep.subr.bf16.mxu0 0
    %507 = vmatpush1.bf16.msra.mxu0 0
    %508 = vmatprep.subr.bf16.mxu0 0
    %509 = vmatpush1.bf16.msra.mxu0 0
    %510 = vmatprep.subr.bf16.mxu0 0
    %511 = vmatpush1.bf16.msra.mxu0 0
    %512 = vmatprep.subr.bf16.mxu0 0
    %513 = vmatpush1.bf16.msra.mxu0 0
    %514 = vmatprep.subr.bf16.mxu0 0
    %515 = vmatpush1.bf16.msra.mxu0 0
    %516 = vmatprep.subr.bf16.mxu0 0
    %517 = vmatpush1.bf16.msra.mxu0 0
    %518 = vmatprep.subr.bf16.mxu0 0
    %519 = vmatpush1.bf16.msra.mxu0 0
    %520 = vmatprep.subr.bf16.mxu0 0
    %521 = vmatpush1.bf16.msra.mxu0 0
    %522 = vmatprep.subr.bf16.mxu0 0
    %523 = vmatpush1.bf16.msra.mxu0 0
    %524 = vmatprep.subr.bf16.mxu0 0
    %525 = vmatpush1.bf16.msra.mxu0 0
    %526 = vmatprep.subr.bf16.mxu0 0
    %527 = vmatpush1.bf16.msra.mxu0 0
    %528 = vmatprep.subr.bf16.mxu0 0
    %529 = vmatpush1.bf16.msra.mxu0 0
    %530 = vmatprep.mubr.bf16.mxu0 0
    %531 = vmatmul.mubr.bf16.gmra.mrb[0].mxu0 %v490
    %v532 = vpop.f32.mrb[0].mxu0
    %v533 = vadd.f32 %v487, %v532
    %v534 = vpop.f32.mrb[0].mxu0
    %v535 = vadd.f32 %v487, %v534
    %v536 = vpop.f32.mrb[0].mxu0
    %v537 = vpop.f32.mrb[0].mxu0
    %538 = vdwg.mxu0
    %v539 = vmax.f32 %v533, 0.0
    %v540 = vmax.f32 %v535, 0.0
    %v541 = vadd.f32 %v539, %v48
    %v542 = vadd.f32 %v540, %v49
    %v543 = vld [vmem:[%s8] sm:$0xff]
    %v544 = vld [vmem:[%s9] sm:$0xff]
    %545 = vadd.xlane.f32.xlu0 %v541
    %v546 = vpop.xlane.xlu0 %545
    %v547 = vrot.slane %v546, 4
    %v548 = vadd.f32 %v546, %v547
    %v549 = vrot.slane %v548, 2
    %v550 = vadd.f32 %v548, %v549
    %v551 = vrot.slane %v550, 1
    %v552 = vadd.f32 %v550, %v551
    %s553 = vtos %v552
    %v554 = vrcp.pop 1024.0
    %s555 = vtos %v554
    %s556 = smul.f32 %s553, %s555
    %v557 = vstv %s556
    %v558 = vsub.f32 %v541, %v557
    %v559 = vmul.f32 %v558, %v558
    %560 = vadd.xlane.f32.xlu0 %v559
    %v561 = vpop.xlane.xlu0 %560
    %v562 = vrot.slane %v561, 4
    %v563 = vadd.f32 %v561, %v562
    %v564 = vrot.slane %v563, 2
    %v565 = vadd.f32 %v563, %v564
    %v566 = vrot.slane %v565, 1
    %v567 = vadd.f32 %v565, %v566
    %s568 = vtos %v567
    %v569 = vrcp.pop 1024.0
    %s570 = vtos %v569
    %s571 = smul.f32 %s568, %s570
    %s572 = sadd.f32 %s571, 1e-05
    %v573 = vstv %s572
    %v574 = vrsqrt.pop %v573
    %s575 = vtos %v574
    %v576 = vstv %s575
    %v577 = vmul.f32 %v558, %v576
    %v578 = vmul.f32 %v577, %v543
    %v579 = vadd.f32 %v578, %v544
    %580 = vst [vmem:[#allocation5] sm:$0xff] %v579
    %581 = vadd.xlane.f32.xlu0 %v542
    %v582 = vpop.xlane.xlu0 %581
    %v583 = vrot.slane %v582, 4
    %v584 = vadd.f32 %v582, %v583
    %v585 = vrot.slane %v584, 2
    %v586 = vadd.f32 %v584, %v585
    %v587 = vrot.slane %v586, 1
    %v588 = vadd.f32 %v586, %v587
    %s589 = vtos %v588
    %v590 = vrcp.pop 1024.0
    %s591 = vtos %v590
    %s592 = smul.f32 %s589, %s591
    %v593 = vstv %s592
    %v594 = vsub.f32 %v542, %v593
    %v595 = vmul.f32 %v594, %v594
    %596 = vadd.xlane.f32.xlu0 %v595
    %v597 = vpop.xlane.xlu0 %596
    %v598 = vrot.slane %v597, 4
    %v599 = vadd.f32 %v597, %v598
    %v600 = vrot.slane %v599, 2
    %v601 = vadd.f32 %v599, %v600
    %v602 = vrot.slane %v601, 1
    %v603 = vadd.f32 %v601, %v602
    %s604 = vtos %v603
    %v605 = vrcp.pop 1024.0
    %s606 = vtos %v605
    %s607 = smul.f32 %s604, %s606
    %s608 = sadd.f32 %s607, 1e-05
    %v609 = vstv %s608
    %v610 = vrsqrt.pop %v609
    %s611 = vtos %v610
    %v612 = vstv %s611
    %v613 = vmul.f32 %v594, %v612
    %v614 = vmul.f32 %v613, %v543
    %v615 = vadd.f32 %v614, %v544
    %616 = vst [vmem:[#allocation5 + $0x8] sm:$0xff] %v615
    // Predicated region
    $region46: #{tpu_custom_call.1} parent=1 // pred_check
      _
    $region47: #{tpu_custom_call.1} parent=1 // pred_check_branch
      %618 = sbr.rel (0) target = $region49
    $region48: #{tpu_custom_call.1} parent=1 // pred_region
      %s620 = ssub.s32 256, 256
      %621 = vsyncadd [#allocation3], %s620
      %s623 = sshll.u32 [#allocation5], 4
      %s624 = int_to_ptr.vmem [resolvable:$true] %s623
      %626 = dma.vmem_to_hbm [thread:$0]  %s624, 256, %s10, [#allocation3]
    $region49: #{tpu_custom_call.1} parent=1 // pred_fallthru
      _
    // Predicated region
    $region50: #{tpu_custom_call.1} parent=1 // pred_check
      _
    $region51: #{tpu_custom_call.1} parent=1 // pred_check_branch
      %628 = sbr.rel (0) target = $region53
    $region52: #{tpu_custom_call.1} parent=1 // pred_region
      %629 = dma.done [#allocation3], 256
    $region53: #{tpu_custom_call.1} parent=1 // pred_fallthru
      _
    %630 = vsyncpa [#allocation3], 1
    %631 = vsyncpa [#allocation4], 1

</llo_original>
